<compile_context>
chip_gen: v7x
topology: tpu7x:2x2x1
jax: 0.10.0
libtpu: 0.0.40
codegen_flags: <defaults>
</compile_context>

<pallas_src>
import functools

import jax
import jax.numpy as jnp
from jax.experimental import pallas as pl
from jax.experimental.pallas import tpu as pltpu


def _round_up(n, m):
    return ((n + m - 1) // m) * m


def _mlp_kernel(x_ref, w_ref, b_ref, o_ref, *, n_layers, row_offs, row_sizes):
    """Fused MLP: x -> [Linear+ReLU]*(n-1) -> Linear -> tanh.

    x_ref : (B, in0_pad)   f32   lane-padded input activations
    w_ref : (sum_rows, W)  bf16  all layer weights, (in, out) layout, row-concat
    b_ref : (n_layers, W)  f32   all biases
    o_ref : (B, W)         f32   padded output (lane-dense store)

    Static ref slices carve out each layer's weight block / bias row, keeping the
    pallas_call at 3 operands; all intermediates stay resident in vregs/VMEM.
    """
    x = x_ref[...]                                           # f32 activations
    for i in range(n_layers):
        w = w_ref[pl.ds(row_offs[i], row_sizes[i]), :]       # bf16 (in_pad_i, W)
        b = b_ref[pl.ds(i, 1), :]                            # f32  (1, W)
        # bf16 operands feed the MXU; accumulate in f32 (preferred_element_type).
        y = jnp.dot(x.astype(w.dtype), w,
                    preferred_element_type=jnp.float32) + b
        if i < n_layers - 1:
            x = jnp.maximum(y, 0.0)                          # ReLU  (VPU, f32)
        else:
            x = jnp.tanh(y)                                  # tanh  (EUP, f32)
    o_ref[...] = x.astype(o_ref.dtype)


def _mlp_forward(state, w_all, b_all, *, n_layers, action_n, in0_pad,
                 row_offs, row_sizes, true_dims):
    """Fused forward over packed params. Returns (B, action_n)."""
    x = state.astype(jnp.float32)
    B = x.shape[0]
    if x.shape[1] != in0_pad:                 # zero-pad input features (fuses)
        x = jnp.pad(x, ((0, 0), (0, in0_pad - x.shape[1])))
    W = w_all.shape[1]

    # Advisory cost estimate from TRUE (unpadded) dims.
    flops = 0
    for i in range(n_layers):
        d_in, d_out = true_dims[i], true_dims[i + 1]
        flops += 2 * B * d_in * d_out + B * d_out
    transcendentals = B * true_dims[-1]
    # bytes_accessed reflects actual traffic (padded slabs, bf16 weights).
    bytes_accessed = (4 * int(x.size) + 2 * int(w_all.size)
                      + 4 * int(b_all.size) + 4 * B * W)

    kernel = functools.partial(
        _mlp_kernel, n_layers=n_layers, row_offs=row_offs, row_sizes=row_sizes)

    vmem = pltpu.MemorySpace.VMEM
    y = pl.pallas_call(
        kernel,
        out_shape=jax.ShapeDtypeStruct((B, W), jnp.float32),
        in_specs=[pl.BlockSpec(memory_space=vmem) for _ in range(3)],
        out_specs=pl.BlockSpec(memory_space=vmem),
        cost_estimate=pl.CostEstimate(
            flops=int(flops),
            transcendentals=int(transcendentals),
            bytes_accessed=int(bytes_accessed),
        ),
    )(x, w_all, b_all)
    # Strip lane padding outside the kernel (keeps in-kernel stores lane-dense).
    return y[:, :action_n]


class ActorPallas:
    """JAX/Pallas port of the PyTorch Actor module (MLP policy network)."""

    def __init__(self, state_n, action_n, layer_nodes, seed):
        self.state_n = state_n
        self.action_n = action_n
        self.layer_nodes = list(layer_nodes)

        dims = [state_n] + self.layer_nodes + [action_n]
        n_layers = len(dims) - 1
        key = jax.random.PRNGKey(seed)

        # Torch-layout (out, in) f32 params -- kept for the pure-JAX reference.
        self.weights, self.biases = [], []
        for i in range(n_layers):
            fan_in, fan_out = dims[i], dims[i + 1]
            key, kw, kb = jax.random.split(key, 3)
            # Deterministic init mirroring torch.nn.Linear default:
            # U(-1/sqrt(fan_in), 1/sqrt(fan_in)) for both weight and bias.
            lim = 1.0 / float(fan_in) ** 0.5
            self.weights.append(
                jax.random.uniform(kw, (fan_out, fan_in), jnp.float32, -lim, lim))
            self.biases.append(
                jax.random.uniform(kb, (fan_out,), jnp.float32, -lim, lim))

        # ---- Pack kernel params once (never per forward). ----
        # Common padded output width W (multiple of 128, lane-dense everywhere).
        W = max(_round_up(d, 128) for d in dims[1:])
        # First-layer input rows padded to a multiple of 16 (bf16 sublane pack).
        in0_pad = _round_up(state_n, 16)
        row_sizes, row_offs, off = [], [], 0
        for i in range(n_layers):
            rows = in0_pad if i == 0 else W
            row_sizes.append(rows)
            row_offs.append(off)
            off += rows

        w_all = jnp.zeros((off, W), jnp.float32)
        b_all = jnp.zeros((n_layers, W), jnp.float32)
        for i in range(n_layers):
            w_t = self.weights[i].T                       # (in, out)
            w_all = w_all.at[row_offs[i]:row_offs[i] + dims[i],
                             :dims[i + 1]].set(w_t)
            b_all = b_all.at[i, :dims[i + 1]].set(self.biases[i])
        # Padded rows/cols are exact zeros (also exact in bf16), so padded
        # channels stay 0 through ReLU and tanh(0)=0 in padded output lanes.
        self._w_all = w_all.astype(jnp.bfloat16)          # MXU operands
        self._b_all = b_all                                # f32 bias add

        self._forward = jax.jit(functools.partial(
            _mlp_forward,
            n_layers=n_layers,
            action_n=action_n,
            in0_pad=in0_pad,
            row_offs=tuple(row_offs),
            row_sizes=tuple(row_sizes),
            true_dims=tuple(dims),
        ))
        # TODO(synk): if batch is ever scaled to >~256, add a batch grid axis
        # (activation/output blocks (128, W), weights resident) with
        # dimension_semantics=("parallel",) so v7x's 2 TensorCores split rows.

    def __call__(self, state):
        return self._forward(state, self._w_all, self._b_all)


def _reference_forward(actor, state):
    """Pure-JAX f32 reference for correctness check (un-padded torch layout)."""
    x = state.astype(jnp.float32)
    for w, b in zip(actor.weights[:-1], actor.biases[:-1]):
        x = jnp.maximum(x @ w.T + b, 0.0)
    return jnp.tanh(x @ actor.weights[-1].T + actor.biases[-1])


if __name__ == "__main__":
    batch = 8
    state_n = 16
    action_n = 4
    layer_nodes = [32, 32]

    actor = ActorPallas(state_n, action_n, layer_nodes, seed=0)

    key = jax.random.PRNGKey(0)
    state = jax.random.normal(key, (batch, state_n), jnp.float32)

    out = actor(state)
    out = jax.block_until_ready(out)

    ref = _reference_forward(actor, state)
    assert out.shape == (batch, action_n), out.shape
    # bf16 MXU operands with f32 accumulation: use bf16-appropriate tolerance.
    assert jnp.allclose(out, ref, atol=2e-2, rtol=2e-2), "mismatch vs reference"

    print("KERNEL_OK")
</pallas_src>

<mosaic_0001>
module attributes {stable_mosaic.version = 11 : i64} {
  func.func @_mlp_kernel(%arg0: memref<8x16xf32, #tpu.memory_space<vmem>>, %arg1: memref<272x128xbf16, #tpu.memory_space<vmem>>, %arg2: memref<3x128xf32, #tpu.memory_space<vmem>>, %arg3: memref<8x128xf32, #tpu.memory_space<vmem>>) attributes {dimension_semantics = [], scalar_prefetch = 0 : i64, scratch_operands = 0 : i64, tpu.core_type = #tpu.core_type<tc>} {
    %c0 = arith.constant 0 : index
    %c0_0 = arith.constant 0 : index
    %0 = vector.load %arg0[%c0, %c0_0] : memref<8x16xf32, #tpu.memory_space<vmem>>, vector<8x16xf32>
    %c0_1 = arith.constant 0 : index
    %c0_2 = arith.constant 0 : index
    %1 = vector.load %arg1[%c0_1, %c0_2] : memref<272x128xbf16, #tpu.memory_space<vmem>>, vector<16x128xbf16>
    %c0_3 = arith.constant 0 : index
    %c0_4 = arith.constant 0 : index
    %2 = vector.load %arg2[%c0_3, %c0_4] : memref<3x128xf32, #tpu.memory_space<vmem>>, vector<1x128xf32>
    %3 = arith.truncf %0 : vector<8x16xf32> to vector<8x16xbf16>
    %cst = arith.constant dense<0.000000e+00> : vector<8x128xf32>
    %4 = tpu.matmul %3, %1, %cst {dimension_numbers = #tpu.dot_dimension_numbers<[1], [0], [0], [1], [0, 0, 1, 1], [], []>} : vector<8x16xbf16>, vector<16x128xbf16>, vector<8x128xf32> -> vector<8x128xf32>
    %5 = vector.broadcast %2 : vector<1x128xf32> to vector<8x128xf32>
    %6 = arith.addf %4, %5 : vector<8x128xf32>
    %cst_5 = arith.constant 0.000000e+00 : f32
    %7 = vector.broadcast %cst_5 : f32 to vector<8x128xf32>
    %8 = arith.maximumf %6, %7 : vector<8x128xf32>
    %c16 = arith.constant 16 : index
    %c0_6 = arith.constant 0 : index
    %9 = vector.load %arg1[%c16, %c0_6] : memref<272x128xbf16, #tpu.memory_space<vmem>>, vector<128x128xbf16>
    %c1 = arith.constant 1 : index
    %c0_7 = arith.constant 0 : index
    %10 = vector.load %arg2[%c1, %c0_7] : memref<3x128xf32, #tpu.memory_space<vmem>>, vector<1x128xf32>
    %11 = arith.truncf %8 : vector<8x128xf32> to vector<8x128xbf16>
    %cst_8 = arith.constant dense<0.000000e+00> : vector<8x128xf32>
    %12 = tpu.matmul %11, %9, %cst_8 {dimension_numbers = #tpu.dot_dimension_numbers<[1], [0], [0], [1], [0, 0, 1, 1], [], []>} : vector<8x128xbf16>, vector<128x128xbf16>, vector<8x128xf32> -> vector<8x128xf32>
    %13 = vector.broadcast %10 : vector<1x128xf32> to vector<8x128xf32>
    %14 = arith.addf %12, %13 : vector<8x128xf32>
    %cst_9 = arith.constant 0.000000e+00 : f32
    %15 = vector.broadcast %cst_9 : f32 to vector<8x128xf32>
    %16 = arith.maximumf %14, %15 : vector<8x128xf32>
    %c144 = arith.constant 144 : index
    %c0_10 = arith.constant 0 : index
    %17 = vector.load %arg1[%c144, %c0_10] : memref<272x128xbf16, #tpu.memory_space<vmem>>, vector<128x128xbf16>
    %c2 = arith.constant 2 : index
    %c0_11 = arith.constant 0 : index
    %18 = vector.load %arg2[%c2, %c0_11] : memref<3x128xf32, #tpu.memory_space<vmem>>, vector<1x128xf32>
    %19 = arith.truncf %16 : vector<8x128xf32> to vector<8x128xbf16>
    %cst_12 = arith.constant dense<0.000000e+00> : vector<8x128xf32>
    %20 = tpu.matmul %19, %17, %cst_12 {dimension_numbers = #tpu.dot_dimension_numbers<[1], [0], [0], [1], [0, 0, 1, 1], [], []>} : vector<8x128xbf16>, vector<128x128xbf16>, vector<8x128xf32> -> vector<8x128xf32>
    %21 = vector.broadcast %18 : vector<1x128xf32> to vector<8x128xf32>
    %22 = arith.addf %20, %21 : vector<8x128xf32>
    %23 = math.tanh %22 : vector<8x128xf32>
    %c0_13 = arith.constant 0 : index
    %c0_14 = arith.constant 0 : index
    %24 = vector.load %arg3[%c0_13, %c0_14] : memref<8x128xf32, #tpu.memory_space<vmem>>, vector<8x128xf32>
    tpu.vector_store %arg3[%c0_13, %c0_14], %23 {strides = array<i32>} : memref<8x128xf32, #tpu.memory_space<vmem>>, vector<8x128xf32>,
    return
  }
}

</mosaic_0001>

<llo_original>
// kernel: _mlp_forward.1
$region0: #{_mlp_forward.1}
  #allocation0 [shape = 'u32[]', space=smem, size = 0x4, offset = 0x4, fixed_abs, tag = 'smem constant byte address 0x4 - core index']
  #allocation1 [shape = 'u32[144,128]{1,0:T(1,128)}', space=vmem, size = 0x12000, scoped, tag = 'internal scratch']
  %s0 = inlined_call_operand.hbm [shape: f32[8,16], index: 0, kind: input, shape index: {}]
  %s1 = inlined_call_operand.hbm [shape: bf16[272,128], index: 1, kind: input, shape index: {}]
  %s2 = inlined_call_operand.vmem [shape: f32[3,128], index: 2, kind: input, shape index: {}]
  %s3 = inlined_call_operand.vmem [shape: f32[8,128], index: 3, kind: output, shape index: {}]
  %s4 = sld [smem:[#allocation0]]
  $region30: #{_mlp_forward.1} parent=0
    _
  %s6 = ssub.s32 1, %s4
  %s7 = scalar_select 0, %s6, %s4
  $region1: #{_mlp_forward.1} parent=0
    #allocation2 [shape = 'u8[4096]{0}', space=vmem, size = 0x1000, scoped, tag = 'input window, operand 0, single buffered']
    #allocation3 [shape = 's32[1]{0}', space=sflag, size = 0x4, scoped, tag = 'scoped memory for _mlp_forward.1']
    #allocation4 [shape = 'u8[69632]{0}', space=vmem, size = 0x11000, scoped, tag = 'input window, operand 1, single buffered']
    #allocation5 [shape = 's32[1]{0}', space=sflag, size = 0x4, scoped, tag = 'scoped memory for _mlp_forward.1']
    %8 = vsyncpa [#allocation3], 0
    %9 = vsyncpa [#allocation5], 0
    // Predicated region
    $region2: #{_mlp_forward.1} parent=1 // pred_check
      _
    $region3: #{_mlp_forward.1} parent=1 // pred_check_branch
      %11 = sbr.rel (0) target = $region5
    $region4: #{_mlp_forward.1} parent=1 // pred_region
      %s13 = ssub.s32 128, 128
      %14 = vsyncadd [#allocation3], %s13
      %s16 = sshll.u32 [#allocation2], 4
      %s17 = int_to_ptr.vmem [resolvable:$true] %s16
      %19 = dma.hbm_to_vmem [thread:$0]  %s0, 128, %s17, [#allocation3]
    $region5: #{_mlp_forward.1} parent=1 // pred_fallthru
      _
    // Predicated region
    $region6: #{_mlp_forward.1} parent=1 // pred_check
      _
    $region7: #{_mlp_forward.1} parent=1 // pred_check_branch
      %21 = sbr.rel (0) target = $region9
    $region8: #{_mlp_forward.1} parent=1 // pred_region
      %s23 = ssub.s32 2176, 2176
      %24 = vsyncadd [#allocation5], %s23
      %s25 = sshll.u32 [#allocation4], 4
      %s26 = int_to_ptr.vmem [resolvable:$true] %s25
      %31 = dma.hbm_to_vmem [thread:$0]  %s1, 2176, %s26, [#allocation5], 64, 64, 4
    $region9: #{_mlp_forward.1} parent=1 // pred_fallthru
      _
    // Predicated region
    $region10: #{_mlp_forward.1} parent=1 // pred_check
      _
    $region11: #{_mlp_forward.1} parent=1 // pred_check_branch
      %33 = sbr.rel (0) target = $region13
    $region12: #{_mlp_forward.1} parent=1 // pred_region
      _
    $region13: #{_mlp_forward.1} parent=1 // pred_fallthru
      _
    // Predicated region
    $region14: #{_mlp_forward.1} parent=1 // pred_check
      _
    $region15: #{_mlp_forward.1} parent=1 // pred_check_branch
      %35 = sbr.rel (0) target = $region17
    $region16: #{_mlp_forward.1} parent=1 // pred_region
      %36 = dma.done [#allocation3], 128
    $region17: #{_mlp_forward.1} parent=1 // pred_fallthru
      _
    // Predicated region
    $region18: #{_mlp_forward.1} parent=1 // pred_check
      _
    $region19: #{_mlp_forward.1} parent=1 // pred_check_branch
      %38 = sbr.rel (0) target = $region21
    $region20: #{_mlp_forward.1} parent=1 // pred_region
      %39 = dma.done [#allocation5], 2176
    $region21: #{_mlp_forward.1} parent=1 // pred_fallthru
      _
    %v41 = vld [vmem:[#allocation2] sm:$0xff]
    %v42 = vld [vmem:[#allocation4] sm:$0xf]
    %v43 = vld [vmem:[#allocation4 + $0x4] sm:$0xf]
    %v44 = vld [vmem:[%s2] sm:$0x1]
    %v45 = vpack.c.bf16 %v41, %v41
    %v46 = vlaneseq
    %v47 = vshrl.u32 %v46, 7
    %v48 = vsub.s32 0, %v47
    %v49 = vrot.slane %v44, %v48
    %v52 = vunpack.c.l.b16 %v42
    %v53 = vunpack.c.l.b16 %v43
    %v54 = vpack.c.b16 %v53, %v52
    %vm56 = vcmask 130048
    %v58 = vsel %vm56, %v45, 0
    %60 = vmatprep.subr.bf16.mxu0 0
    %61 = vmatpush1.bf16.msra.mxu0 %v54
    %62 = vmatprep.subr.bf16.mxu0 0
    %63 = vmatpush1.bf16.msra.mxu0 0
    %64 = vmatprep.subr.bf16.mxu0 0
    %65 = vmatpush1.bf16.msra.mxu0 0
    %66 = vmatprep.subr.bf16.mxu0 0
    %67 = vmatpush1.bf16.msra.mxu0 0
    %68 = vmatprep.subr.bf16.mxu0 0
    %69 = vmatpush1.bf16.msra.mxu0 0
    %70 = vmatprep.subr.bf16.mxu0 0
    %71 = vmatpush1.bf16.msra.mxu0 0
    %72 = vmatprep.subr.bf16.mxu0 0
    %73 = vmatpush1.bf16.msra.mxu0 0
    %74 = vmatprep.subr.bf16.mxu0 0
    %75 = vmatpush1.bf16.msra.mxu0 0
    %76 = vmatprep.subr.bf16.mxu0 0
    %77 = vmatpush1.bf16.msra.mxu0 0
    %78 = vmatprep.subr.bf16.mxu0 0
    %79 = vmatpush1.bf16.msra.mxu0 0
    %80 = vmatprep.subr.bf16.mxu0 0
    %81 = vmatpush1.bf16.msra.mxu0 0
    %82 = vmatprep.subr.bf16.mxu0 0
    %83 = vmatpush1.bf16.msra.mxu0 0
    %84 = vmatprep.subr.bf16.mxu0 0
    %85 = vmatpush1.bf16.msra.mxu0 0
    %86 = vmatprep.subr.bf16.mxu0 0
    %87 = vmatpush1.bf16.msra.mxu0 0
    %88 = vmatprep.subr.bf16.mxu0 0
    %89 = vmatpush1.bf16.msra.mxu0 0
    %90 = vmatprep.subr.bf16.mxu0 0
    %91 = vmatpush1.bf16.msra.mxu0 0
    %92 = vmatprep.mubr.bf16.mxu0 0
    %93 = vmatmul.mubr.bf16.gmra.mrb[0].mxu0 %v58
    %v94 = vpop.f32.mrb[0].mxu0
    %v95 = vadd.f32 %v49, %v94
    %v96 = vpop.f32.mrb[0].mxu0
    %v97 = vpop.f32.mrb[0].mxu0
    %v98 = vpop.f32.mrb[0].mxu0
    %99 = vdwg.mxu0
    %v100 = vmax.f32 %v95, 0.0
    %v101 = vld [vmem:[#allocation4 + $0x8] sm:$0xf]
    %v102 = vld [vmem:[#allocation4 + $0xc] sm:$0xf]
    %v103 = vld [vmem:[#allocation4 + $0x10] sm:$0xf]
    %v104 = vld [vmem:[#allocation4 + $0x14] sm:$0xf]
    %v105 = vld [vmem:[#allocation4 + $0x18] sm:$0xf]
    %v106 = vld [vmem:[#allocation4 + $0x1c] sm:$0xf]
    %v107 = vld [vmem:[#allocation4 + $0x20] sm:$0xf]
    %v108 = vld [vmem:[#allocation4 + $0x24] sm:$0xf]
    %v109 = vld [vmem:[#allocation4 + $0x28] sm:$0xf]
    %v110 = vld [vmem:[#allocation4 + $0x2c] sm:$0xf]
    %v111 = vld [vmem:[#allocation4 + $0x30] sm:$0xf]
    %v112 = vld [vmem:[#allocation4 + $0x34] sm:$0xf]
    %v113 = vld [vmem:[#allocation4 + $0x38] sm:$0xf]
    %v114 = vld [vmem:[#allocation4 + $0x3c] sm:$0xf]
    %v115 = vld [vmem:[#allocation4 + $0x40] sm:$0xf]
    %v116 = vld [vmem:[#allocation4 + $0x44] sm:$0xf]
    %v117 = vld [vmem:[%s2 + $0x1] sm:$0x1]
    %v118 = vpack.c.bf16 %v100, %v100
    %v119 = vlaneseq
    %v120 = vshrl.u32 %v119, 7
    %v121 = vsub.s32 0, %v120
    %v122 = vrot.slane %v117, %v121
    %v139 = vunpack.c.l.b16 %v101
    %v140 = vunpack.c.l.b16 %v102
    %v141 = vunpack.c.l.b16 %v103
    %v142 = vunpack.c.l.b16 %v104
    %v143 = vunpack.c.l.b16 %v105
    %v144 = vunpack.c.l.b16 %v106
    %v145 = vunpack.c.l.b16 %v107
    %v146 = vunpack.c.l.b16 %v108
    %v147 = vunpack.c.l.b16 %v109
    %v148 = vunpack.c.l.b16 %v110
    %v149 = vunpack.c.l.b16 %v111
    %v150 = vunpack.c.l.b16 %v112
    %v151 = vunpack.c.l.b16 %v113
    %v152 = vunpack.c.l.b16 %v114
    %v153 = vunpack.c.l.b16 %v115
    %v154 = vunpack.c.l.b16 %v116
    %v155 = vpack.c.b16 %v140, %v139
    %v156 = vpack.c.b16 %v142, %v141
    %v157 = vpack.c.b16 %v144, %v143
    %v158 = vpack.c.b16 %v146, %v145
    %v159 = vpack.c.b16 %v148, %v147
    %v160 = vpack.c.b16 %v150, %v149
    %v161 = vpack.c.b16 %v152, %v151
    %v162 = vpack.c.b16 %v154, %v153
    %171 = vmatprep.subr.bf16.mxu0 0
    %172 = vmatpush1.bf16.msra.mxu0 %v155
    %173 = vmatprep.subr.bf16.mxu0 0
    %174 = vmatpush1.bf16.msra.mxu0 %v156
    %175 = vmatprep.subr.bf16.mxu0 0
    %176 = vmatpush1.bf16.msra.mxu0 %v157
    %177 = vmatprep.subr.bf16.mxu0 0
    %178 = vmatpush1.bf16.msra.mxu0 %v158
    %179 = vmatprep.subr.bf16.mxu0 0
    %180 = vmatpush1.bf16.msra.mxu0 %v159
    %181 = vmatprep.subr.bf16.mxu0 0
    %182 = vmatpush1.bf16.msra.mxu0 %v160
    %183 = vmatprep.subr.bf16.mxu0 0
    %184 = vmatpush1.bf16.msra.mxu0 %v161
    %185 = vmatprep.subr.bf16.mxu0 0
    %186 = vmatpush1.bf16.msra.mxu0 %v162
    %187 = vmatprep.subr.bf16.mxu0 0
    %188 = vmatpush1.bf16.msra.mxu0 0
    %189 = vmatprep.subr.bf16.mxu0 0
    %190 = vmatpush1.bf16.msra.mxu0 0
    %191 = vmatprep.subr.bf16.mxu0 0
    %192 = vmatpush1.bf16.msra.mxu0 0
    %193 = vmatprep.subr.bf16.mxu0 0
    %194 = vmatpush1.bf16.msra.mxu0 0
    %195 = vmatprep.subr.bf16.mxu0 0
    %196 = vmatpush1.bf16.msra.mxu0 0
    %197 = vmatprep.subr.bf16.mxu0 0
    %198 = vmatpush1.bf16.msra.mxu0 0
    %199 = vmatprep.subr.bf16.mxu0 0
    %200 = vmatpush1.bf16.msra.mxu0 0
    %201 = vmatprep.subr.bf16.mxu0 0
    %202 = vmatpush1.bf16.msra.mxu0 0
    %203 = vmatprep.mubr.bf16.mxu0 0
    %204 = vmatmul.mubr.bf16.gmra.mrb[0].mxu0 %v118
    %v205 = vpop.f32.mrb[0].mxu0
    %v206 = vadd.f32 %v122, %v205
    %v207 = vpop.f32.mrb[0].mxu0
    %v208 = vpop.f32.mrb[0].mxu0
    %v209 = vpop.f32.mrb[0].mxu0
    %210 = vdwg.mxu0
    %v211 = vmax.f32 %v206, 0.0
    %v212 = vld [vmem:[#allocation4 + $0x48] sm:$0xf]
    %v213 = vld [vmem:[#allocation4 + $0x4c] sm:$0xf]
    %v214 = vld [vmem:[#allocation4 + $0x50] sm:$0xf]
    %v215 = vld [vmem:[#allocation4 + $0x54] sm:$0xf]
    %v216 = vld [vmem:[#allocation4 + $0x58] sm:$0xf]
    %v217 = vld [vmem:[#allocation4 + $0x5c] sm:$0xf]
    %v218 = vld [vmem:[#allocation4 + $0x60] sm:$0xf]
    %v219 = vld [vmem:[#allocation4 + $0x64] sm:$0xf]
    %v220 = vld [vmem:[#allocation4 + $0x68] sm:$0xf]
    %v221 = vld [vmem:[#allocation4 + $0x6c] sm:$0xf]
    %v222 = vld [vmem:[#allocation4 + $0x70] sm:$0xf]
    %v223 = vld [vmem:[#allocation4 + $0x74] sm:$0xf]
    %v224 = vld [vmem:[#allocation4 + $0x78] sm:$0xf]
    %v225 = vld [vmem:[#allocation4 + $0x7c] sm:$0xf]
    %v226 = vld [vmem:[#allocation4 + $0x80] sm:$0xf]
    %v227 = vld [vmem:[#allocation4 + $0x84] sm:$0xf]
    %v228 = vld [vmem:[%s2 + $0x2] sm:$0x1]
    %v229 = vpack.c.bf16 %v211, %v211
    %v230 = vlaneseq
    %v231 = vshrl.u32 %v230, 7
    %v232 = vsub.s32 0, %v231
    %v233 = vrot.slane %v228, %v232
    %v250 = vunpack.c.l.b16 %v212
    %v251 = vunpack.c.l.b16 %v213
    %v252 = vunpack.c.l.b16 %v214
    %v253 = vunpack.c.l.b16 %v215
    %v254 = vunpack.c.l.b16 %v216
    %v255 = vunpack.c.l.b16 %v217
    %v256 = vunpack.c.l.b16 %v218
    %v257 = vunpack.c.l.b16 %v219
    %v258 = vunpack.c.l.b16 %v220
    %v259 = vunpack.c.l.b16 %v221
    %v260 = vunpack.c.l.b16 %v222
    %v261 = vunpack.c.l.b16 %v223
    %v262 = vunpack.c.l.b16 %v224
    %v263 = vunpack.c.l.b16 %v225
    %v264 = vunpack.c.l.b16 %v226
    %v265 = vunpack.c.l.b16 %v227
    %v266 = vpack.c.b16 %v251, %v250
    %v267 = vpack.c.b16 %v253, %v252
    %v268 = vpack.c.b16 %v255, %v254
    %v269 = vpack.c.b16 %v257, %v256
    %v270 = vpack.c.b16 %v259, %v258
    %v271 = vpack.c.b16 %v261, %v260
    %v272 = vpack.c.b16 %v263, %v262
    %v273 = vpack.c.b16 %v265, %v264
    %282 = vmatprep.subr.bf16.mxu0 0
    %283 = vmatpush1.bf16.msra.mxu0 %v266
    %284 = vmatprep.subr.bf16.mxu0 0
    %285 = vmatpush1.bf16.msra.mxu0 %v267
    %286 = vmatprep.subr.bf16.mxu0 0
    %287 = vmatpush1.bf16.msra.mxu0 %v268
    %288 = vmatprep.subr.bf16.mxu0 0
    %289 = vmatpush1.bf16.msra.mxu0 %v269
    %290 = vmatprep.subr.bf16.mxu0 0
    %291 = vmatpush1.bf16.msra.mxu0 %v270
    %292 = vmatprep.subr.bf16.mxu0 0
    %293 = vmatpush1.bf16.msra.mxu0 %v271
    %294 = vmatprep.subr.bf16.mxu0 0
    %295 = vmatpush1.bf16.msra.mxu0 %v272
    %296 = vmatprep.subr.bf16.mxu0 0
    %297 = vmatpush1.bf16.msra.mxu0 %v273
    %298 = vmatprep.subr.bf16.mxu0 0
    %299 = vmatpush1.bf16.msra.mxu0 0
    %300 = vmatprep.subr.bf16.mxu0 0
    %301 = vmatpush1.bf16.msra.mxu0 0
    %302 = vmatprep.subr.bf16.mxu0 0
    %303 = vmatpush1.bf16.msra.mxu0 0
    %304 = vmatprep.subr.bf16.mxu0 0
    %305 = vmatpush1.bf16.msra.mxu0 0
    %306 = vmatprep.subr.bf16.mxu0 0
    %307 = vmatpush1.bf16.msra.mxu0 0
    %308 = vmatprep.subr.bf16.mxu0 0
    %309 = vmatpush1.bf16.msra.mxu0 0
    %310 = vmatprep.subr.bf16.mxu0 0
    %311 = vmatpush1.bf16.msra.mxu0 0
    %312 = vmatprep.subr.bf16.mxu0 0
    %313 = vmatpush1.bf16.msra.mxu0 0
    %314 = vmatprep.mubr.bf16.mxu0 0
    %315 = vmatmul.mubr.bf16.gmra.mrb[0].mxu0 %v229
    %v316 = vpop.f32.mrb[0].mxu0
    %v317 = vadd.f32 %v233, %v316
    %v318 = vpop.f32.mrb[0].mxu0
    %v319 = vpop.f32.mrb[0].mxu0
    %v320 = vpop.f32.mrb[0].mxu0
    %321 = vdwg.mxu0
    %v322 = vtanh.pop %v317
    %323 = vst [vmem:[%s3] sm:$0xff] %v322
    // Predicated region
    $region22: #{_mlp_forward.1} parent=1 // pred_check
      _
    $region23: #{_mlp_forward.1} parent=1 // pred_check_branch
      %325 = sbr.rel (0) target = $region25
    $region24: #{_mlp_forward.1} parent=1 // pred_region
      _
    $region25: #{_mlp_forward.1} parent=1 // pred_fallthru
      _
    // Predicated region
    $region26: #{_mlp_forward.1} parent=1 // pred_check
      _
    $region27: #{_mlp_forward.1} parent=1 // pred_check_branch
      %327 = sbr.rel (0) target = $region29
    $region28: #{_mlp_forward.1} parent=1 // pred_region
      _
    $region29: #{_mlp_forward.1} parent=1 // pred_fallthru
      _
    %328 = vsyncpa [#allocation3], 1
    %329 = vsyncpa [#allocation5], 1

</llo_original>
